<compile_context>
chip_gen: v7x
topology: tpu7x:2x2x1
jax: 0.10.0
libtpu: 0.0.40
codegen_flags: <defaults>
</compile_context>

<pallas_src>
import functools

import jax
import jax.numpy as jnp
from jax.experimental import pallas as pl
from jax.experimental.pallas import tpu as pltpu

BN_EPS = 1e-5


def _round_up(x, m):
    return (x + m - 1) // m * m


def _cdiv(a, b):
    return -(-a // b)


def _physical_vmem_bytes():
    try:
        return int(pltpu.get_tpu_info().vmem_capacity_bytes)
    except Exception:
        return 64 * 1024 * 1024  # conservative: v7x per-TensorCore VMEM


# ---------------------------------------------------------------------------
# Pass 1: yT tile = W^T @ patches^T  (written out)  +  per-channel sum/sumsq
# ---------------------------------------------------------------------------
def _matmul_stats_kernel(patchesT_ref, wT_ref, yT_ref, sum_ref, sumsq_ref):
    @pl.when(pl.program_id(1) == 0)
    def _():
        sum_ref[...] = jnp.zeros_like(sum_ref)
        sumsq_ref[...] = jnp.zeros_like(sumsq_ref)

    yT = jnp.dot(wT_ref[...], patchesT_ref[...],
                 preferred_element_type=jnp.float32)        # [Cout, tm] f32
    yT_ref[...] = yT
    sum_ref[...] += jnp.sum(yT, axis=1, keepdims=True)
    sumsq_ref[...] += jnp.sum(yT * yT, axis=1, keepdims=True)


# ---------------------------------------------------------------------------
# Pass 2: pure elementwise  out = relu(yT * scale + shift)   (folded BN)
# ---------------------------------------------------------------------------
def _bn_relu_kernel(yT_ref, scale_ref, shift_ref, outT_ref):
    z = yT_ref[...] * scale_ref[...] + shift_ref[...]
    outT_ref[...] = jnp.maximum(z, 0.0).astype(outT_ref.dtype)


# ---------------------------------------------------------------------------
# Wrapper-side layout plumbing (XLA): dilation, padding, im2col^T, weight^T
# ---------------------------------------------------------------------------
def _im2col_transposed(x, k, stride, padding, output_padding):
    """x: [N, Cin, H, W] -> patches^T [Cin*k*k, N*Ho*Wo] (K-major = cin,ki,kj)."""
    N, Cin, H, W = x.shape
    Hd = (H - 1) * stride + 1
    Wd = (W - 1) * stride + 1
    x_dil = jnp.zeros((N, Cin, Hd, Wd), x.dtype)
    x_dil = x_dil.at[:, :, ::stride, ::stride].set(x)
    pad = k - 1 - padding
    x_pad = jnp.pad(
        x_dil,
        ((0, 0), (0, 0), (pad, pad + output_padding), (pad, pad + output_padding)),
    )
    Ho = (H - 1) * stride - 2 * padding + k + output_padding
    Wo = (W - 1) * stride - 2 * padding + k + output_padding

    cols = []
    for ki in range(k):
        for kj in range(k):
            cols.append(x_pad[:, :, ki:ki + Ho, kj:kj + Wo])   # [N, Cin, Ho, Wo]
    patches = jnp.stack(cols, axis=2)                          # [N, Cin, k*k, Ho, Wo]
    patchesT = patches.transpose(1, 2, 0, 3, 4).reshape(Cin * k * k, N * Ho * Wo)
    return patchesT, Ho, Wo


def _weight_matrix_T(weight, k):
    """ConvTranspose2d weight [Cin, Cout, kH, kW] -> W^T [Cout, Cin*k*k]
    (spatially flipped; K ordering matches _im2col_transposed)."""
    cin, cout = weight.shape[0], weight.shape[1]
    w_flip = weight[:, :, ::-1, ::-1]
    return w_flip.transpose(1, 0, 2, 3).reshape(cout, cin * k * k)


@functools.partial(jax.jit,
                   static_argnames=("kernel_size", "stride", "padding",
                                    "output_padding", "block_m",
                                    "compute_dtype"))
def convt_bn_relu(x, weight, bias, gamma, beta, *, kernel_size, stride,
                  padding, output_padding, block_m=1024,
                  compute_dtype=jnp.bfloat16):
    # `bias` is intentionally unused: train-mode BatchNorm cancels it exactly.
    del bias
    N, Cin, H, W = x.shape
    Cout = weight.shape[1]

    # Cast BEFORE the k^2 im2col expansion (halves wrapper-side HBM traffic).
    x = x.astype(compute_dtype)
    patchesT, Ho, Wo = _im2col_transposed(x, kernel_size, stride, padding,
                                          output_padding)
    wT = _weight_matrix_T(weight, kernel_size).astype(compute_dtype)

    K, M = patchesT.shape
    K_pad = _round_up(K, 16)              # bf16: two rows per sublane

    # ---- VMEM budget -> tile size + explicit scoped-VMEM limit --------------
    phys_vmem = _physical_vmem_bytes()
    vmem_limit = int(min(phys_vmem * 3 // 4, 96 * 2 ** 20))
    # bytes per M-column held per pipeline step (double-buffered):
    #   patches tile (bf16) + yT output tile (f32); weights/stats negligible.
    per_col = 2 * K_pad * 2 + 2 * Cout * 4
    tm_cap = max(128, (vmem_limit // 2 // per_col) // 128 * 128)
    tm = min(_round_up(block_m, 128), _round_up(M, 128), tm_cap)

    num_tiles = _cdiv(M, tm)
    n_splits = 2 if num_tiles >= 2 else 1     # v7x: shard pass 1 over 2 TCs
    tiles_per_split = _cdiv(num_tiles, n_splits)
    total_tiles = n_splits * tiles_per_split
    M_pad = total_tiles * tm

    patchesT = jnp.pad(patchesT, ((0, K_pad - K), (0, M_pad - M)))
    wT = jnp.pad(wT, ((0, 0), (0, K_pad - K)))

    # ---- Pass 1: matmul + global per-channel sum / sum-of-squares ----------
    yT, sums, sumsqs = pl.pallas_call(
        _matmul_stats_kernel,
        out_shape=(jax.ShapeDtypeStruct((Cout, M_pad), jnp.float32),
                   jax.ShapeDtypeStruct((n_splits, Cout, 1), jnp.float32),
                   jax.ShapeDtypeStruct((n_splits, Cout, 1), jnp.float32)),
        grid=(n_splits, tiles_per_split),
        in_specs=[
            pl.BlockSpec((K_pad, tm),
                         lambda c, t: (0, c * tiles_per_split + t)),
            pl.BlockSpec((Cout, K_pad), lambda c, t: (0, 0)),
        ],
        out_specs=(
            pl.BlockSpec((Cout, tm),
                         lambda c, t: (0, c * tiles_per_split + t)),
            pl.BlockSpec((None, Cout, 1), lambda c, t: (c, 0, 0)),
            pl.BlockSpec((None, Cout, 1), lambda c, t: (c, 0, 0)),
        ),
        compiler_params=pltpu.CompilerParams(
            dimension_semantics=("parallel", "arbitrary"),
            vmem_limit_bytes=vmem_limit),
    )(patchesT, wT)

    # Fold BatchNorm (training-mode batch stats) into per-channel scale/shift.
    inv_m = jnp.float32(1.0 / M)          # real column count; padding adds 0
    mean = jnp.sum(sums, axis=0) * inv_m                     # (Cout, 1)
    var = jnp.maximum(jnp.sum(sumsqs, axis=0) * inv_m - mean * mean, 0.0)
    g = gamma.reshape(Cout, 1).astype(jnp.float32)
    b = beta.reshape(Cout, 1).astype(jnp.float32)
    scale = g * jax.lax.rsqrt(var + BN_EPS)
    shift = b - mean * scale

    # ---- Pass 2: elementwise BN + ReLU over lane-dense [Cout, tm] tiles -----
    # Output kept f32 to match the PyTorch module's dtype; TODO(synk): emit
    # bf16 here if downstream tolerance allows (halves writeback traffic).
    outT = pl.pallas_call(
        _bn_relu_kernel,
        out_shape=jax.ShapeDtypeStruct((Cout, M_pad), jnp.float32),
        grid=(total_tiles,),
        in_specs=[
            pl.BlockSpec((Cout, tm), lambda t: (0, t)),
            pl.BlockSpec((Cout, 1), lambda t: (0, 0)),
            pl.BlockSpec((Cout, 1), lambda t: (0, 0)),
        ],
        out_specs=pl.BlockSpec((Cout, tm), lambda t: (0, t)),
        compiler_params=pltpu.CompilerParams(
            dimension_semantics=("parallel",),
            vmem_limit_bytes=vmem_limit),
    )(yT, scale, shift)

    # [Cout, M] -> [Cout, N, Ho, Wo] -> NCHW
    return outT[:, :M].reshape(Cout, N, Ho, Wo).transpose(1, 0, 2, 3)


# ---------------------------------------------------------------------------
# Pure-JAX reference (same math, includes the ConvTranspose bias — which must
# cancel under train-mode BatchNorm).  Inputs rounded through the same compute
# dtype as the kernel's MXU inputs.
# ---------------------------------------------------------------------------
def _reference(x, weight, bias, gamma, beta, *, kernel_size, stride, padding,
               output_padding, compute_dtype=jnp.bfloat16):
    patchesT, Ho, Wo = _im2col_transposed(x, kernel_size, stride, padding,
                                          output_padding)
    wT = _weight_matrix_T(weight, kernel_size)
    p = patchesT.astype(compute_dtype).astype(jnp.float32)
    w = wT.astype(compute_dtype).astype(jnp.float32)
    yT = w @ p + bias[:, None]
    mean = jnp.mean(yT, axis=1, keepdims=True)
    var = jnp.mean((yT - mean) ** 2, axis=1, keepdims=True)
    zT = (yT - mean) * jax.lax.rsqrt(var + BN_EPS) * gamma[:, None] + beta[:, None]
    zT = jnp.maximum(zT, 0.0)
    N, Cout = x.shape[0], weight.shape[1]
    return zT.reshape(Cout, N, Ho, Wo).transpose(1, 0, 2, 3)


if __name__ == "__main__":
    # Small shapes consistent with the module: 16x16 -> 32x32 upsample.
    N, Cin, H, W = 2, 4, 16, 16
    Cout, K_SZ = 8, 3
    STRIDE, PAD, OUT_PAD = 2, 1, 1

    key = jax.random.PRNGKey(0)
    kx, kw, kb, kg, kbt = jax.random.split(key, 5)

    x = jax.random.normal(kx, (N, Cin, H, W), dtype=jnp.float32)
    # ConvTranspose2d weight shape: [in_channels, out_channels, kH, kW]
    weight = 0.1 * jax.random.normal(kw, (Cin, Cout, K_SZ, K_SZ),
                                     dtype=jnp.float32)
    bias = 0.1 * jax.random.normal(kb, (Cout,), dtype=jnp.float32)
    gamma = 1.0 + 0.1 * jax.random.normal(kg, (Cout,), dtype=jnp.float32)
    beta = 0.1 * jax.random.normal(kbt, (Cout,), dtype=jnp.float32)

    out = convt_bn_relu(x, weight, bias, gamma, beta, kernel_size=K_SZ,
                        stride=STRIDE, padding=PAD, output_padding=OUT_PAD,
                        block_m=1024)   # M = 2*32*32 = 2048 -> 2 tiles, 2 splits
    out = jax.block_until_ready(out)

    ref = _reference(x, weight, bias, gamma, beta, kernel_size=K_SZ,
                     stride=STRIDE, padding=PAD, output_padding=OUT_PAD)

    expected_ho = (H - 1) * STRIDE - 2 * PAD + K_SZ + OUT_PAD
    assert out.shape == (N, Cout, expected_ho, expected_ho), out.shape
    assert bool(jnp.all(jnp.isfinite(out)))
    max_err = float(jnp.max(jnp.abs(out - ref)))
    assert bool(jnp.allclose(out, ref, atol=1e-3, rtol=1e-3)), max_err

    print("KERNEL_OK")
</pallas_src>

<mosaic_0001>
module attributes {stable_mosaic.version = 11 : i64} {
  func.func @_bn_relu_kernel(%arg0: i32, %arg1: memref<8x1024xf32, #tpu.memory_space<vmem>>, %arg2: memref<8x1xf32, #tpu.memory_space<vmem>>, %arg3: memref<8x1xf32, #tpu.memory_space<vmem>>, %arg4: memref<8x1024xf32, #tpu.memory_space<vmem>>) attributes {dimension_semantics = [#tpu.dimension_semantics<parallel>], iteration_bounds = array<i64: 2>, scalar_prefetch = 0 : i64, scratch_operands = 0 : i64, tpu.core_type = #tpu.core_type<tc>, window_params = [{transform_indices = @transform_0, window_bounds = array<i64: 8, 1024>}, {pipeline_mode = #tpu.pipeline_mode<synchronous>, transform_indices = @transform_1, window_bounds = array<i64: 8, 1>}, {pipeline_mode = #tpu.pipeline_mode<synchronous>, transform_indices = @transform_2, window_bounds = array<i64: 8, 1>}, {transform_indices = @transform_3, window_bounds = array<i64: 8, 1024>}]} {
    %c0 = arith.constant 0 : index
    %c0_0 = arith.constant 0 : index
    %0 = vector.load %arg1[%c0, %c0_0] : memref<8x1024xf32, #tpu.memory_space<vmem>>, vector<8x1024xf32>
    %c0_1 = arith.constant 0 : index
    %c0_2 = arith.constant 0 : index
    %1 = vector.load %arg2[%c0_1, %c0_2] : memref<8x1xf32, #tpu.memory_space<vmem>>, vector<8x1xf32>
    %2 = vector.broadcast %1 : vector<8x1xf32> to vector<8x1024xf32>
    %3 = arith.mulf %0, %2 : vector<8x1024xf32>
    %c0_3 = arith.constant 0 : index
    %c0_4 = arith.constant 0 : index
    %4 = vector.load %arg3[%c0_3, %c0_4] : memref<8x1xf32, #tpu.memory_space<vmem>>, vector<8x1xf32>
    %5 = vector.broadcast %4 : vector<8x1xf32> to vector<8x1024xf32>
    %6 = arith.addf %3, %5 : vector<8x1024xf32>
    %cst = arith.constant 0.000000e+00 : f32
    %7 = vector.broadcast %cst : f32 to vector<8x1024xf32>
    %8 = arith.maximumf %6, %7 : vector<8x1024xf32>
    %c0_5 = arith.constant 0 : index
    %c0_6 = arith.constant 0 : index
    %9 = vector.load %arg4[%c0_5, %c0_6] : memref<8x1024xf32, #tpu.memory_space<vmem>>, vector<8x1024xf32>
    tpu.vector_store %arg4[%c0_5, %c0_6], %8 {strides = array<i32>} : memref<8x1024xf32, #tpu.memory_space<vmem>>, vector<8x1024xf32>,
    return
  }
  func.func @transform_0(%arg0: i32) -> (i32, i32) {
    %c0_i32 = arith.constant 0 : i32
    %c0_i32_0 = arith.constant 0 : i32
    return %c0_i32, %arg0 : i32, i32
  }
  func.func @transform_1(%arg0: i32) -> (i32, i32) {
    %c0_i32 = arith.constant 0 : i32
    %c0_i32_0 = arith.constant 0 : i32
    %c0_i32_1 = arith.constant 0 : i32
    return %c0_i32, %c0_i32_0 : i32, i32
  }
  func.func @transform_2(%arg0: i32) -> (i32, i32) {
    %c0_i32 = arith.constant 0 : i32
    %c0_i32_0 = arith.constant 0 : i32
    %c0_i32_1 = arith.constant 0 : i32
    return %c0_i32, %c0_i32_0 : i32, i32
  }
  func.func @transform_3(%arg0: i32) -> (i32, i32) {
    %c0_i32 = arith.constant 0 : i32
    %c0_i32_0 = arith.constant 0 : i32
    return %c0_i32, %arg0 : i32, i32
  }
}

module attributes {stable_mosaic.version = 11 : i64} {
  func.func @_matmul_stats_kernel(%arg0: i32, %arg1: i32, %arg2: memref<48x1024xbf16, #tpu.memory_space<vmem>>, %arg3: memref<8x48xbf16, #tpu.memory_space<vmem>>, %arg4: memref<8x1024xf32, #tpu.memory_space<vmem>>, %arg5: memref<1x8x1xf32, #tpu.memory_space<vmem>>, %arg6: memref<1x8x1xf32, #tpu.memory_space<vmem>>) attributes {dimension_semantics = [#tpu.dimension_semantics<parallel>, #tpu.dimension_semantics<arbitrary>], iteration_bounds = array<i64: 2, 1>, scalar_prefetch = 0 : i64, scratch_operands = 0 : i64, tpu.core_type = #tpu.core_type<tc>, window_params = [{transform_indices = @transform_0, window_bounds = array<i64: 48, 1024>}, {pipeline_mode = #tpu.pipeline_mode<synchronous>, transform_indices = @transform_1, window_bounds = array<i64: 8, 48>}, {transform_indices = @transform_2, window_bounds = array<i64: 8, 1024>}, {transform_indices = @transform_3, window_bounds = array<i64: 1, 8, 1>}, {transform_indices = @transform_4, window_bounds = array<i64: 1, 8, 1>}]} {
    %c0_i32 = arith.constant 0 : i32
    %0 = arith.cmpi eq, %arg1, %c0_i32 : i32
    %1 = arith.extui %0 : i1 to i32
    %c0_i32_0 = arith.constant 0 : i32
    %2 = arith.cmpi ne, %1, %c0_i32_0 : i32
    scf.if %2 {
      %cst_20 = arith.constant 0.000000e+00 : f32
      %24 = vector.broadcast %cst_20 : f32 to vector<8x1xf32>
      %c0_21 = arith.constant 0 : index
      %c0_22 = arith.constant 0 : index
      %c0_23 = arith.constant 0 : index
      %25 = vector.load %arg5[%c0_21, %c0_22, %c0_23] : memref<1x8x1xf32, #tpu.memory_space<vmem>>, vector<1x8x1xf32>
      %26 = vector.shape_cast %25 : vector<1x8x1xf32> to vector<8x1xf32>
      %27 = vector.shape_cast %24 : vector<8x1xf32> to vector<1x8x1xf32>
      tpu.vector_store %arg5[%c0_21, %c0_22, %c0_23], %27 {strides = array<i32>} : memref<1x8x1xf32, #tpu.memory_space<vmem>>, vector<1x8x1xf32>,
      %cst_24 = arith.constant 0.000000e+00 : f32
      %28 = vector.broadcast %cst_24 : f32 to vector<8x1xf32>
      %c0_25 = arith.constant 0 : index
      %c0_26 = arith.constant 0 : index
      %c0_27 = arith.constant 0 : index
      %29 = vector.load %arg6[%c0_25, %c0_26, %c0_27] : memref<1x8x1xf32, #tpu.memory_space<vmem>>, vector<1x8x1xf32>
      %30 = vector.shape_cast %29 : vector<1x8x1xf32> to vector<8x1xf32>
      %31 = vector.shape_cast %28 : vector<8x1xf32> to vector<1x8x1xf32>
      tpu.vector_store %arg6[%c0_25, %c0_26, %c0_27], %31 {strides = array<i32>} : memref<1x8x1xf32, #tpu.memory_space<vmem>>, vector<1x8x1xf32>,
    } else {
    }
    %c0 = arith.constant 0 : index
    %c0_1 = arith.constant 0 : index
    %3 = vector.load %arg3[%c0, %c0_1] : memref<8x48xbf16, #tpu.memory_space<vmem>>, vector<8x48xbf16>
    %c0_2 = arith.constant 0 : index
    %c0_3 = arith.constant 0 : index
    %4 = vector.load %arg2[%c0_2, %c0_3] : memref<48x1024xbf16, #tpu.memory_space<vmem>>, vector<48x1024xbf16>
    %cst = arith.constant dense<0.000000e+00> : vector<8x1024xf32>
    %5 = tpu.matmul %3, %4, %cst {dimension_numbers = #tpu.dot_dimension_numbers<[1], [0], [0], [1], [0, 0, 1, 1], [], []>} : vector<8x48xbf16>, vector<48x1024xbf16>, vector<8x1024xf32> -> vector<8x1024xf32>
    %c0_4 = arith.constant 0 : index
    %c0_5 = arith.constant 0 : index
    %6 = vector.load %arg4[%c0_4, %c0_5] : memref<8x1024xf32, #tpu.memory_space<vmem>>, vector<8x1024xf32>
    tpu.vector_store %arg4[%c0_4, %c0_5], %5 {strides = array<i32>} : memref<8x1024xf32, #tpu.memory_space<vmem>>, vector<8x1024xf32>,
    %c0_6 = arith.constant 0 : index
    %c0_7 = arith.constant 0 : index
    %c0_8 = arith.constant 0 : index
    %7 = vector.load %arg5[%c0_6, %c0_7, %c0_8] : memref<1x8x1xf32, #tpu.memory_space<vmem>>, vector<1x8x1xf32>
    %8 = vector.shape_cast %7 : vector<1x8x1xf32> to vector<8x1xf32>
    %cst_9 = arith.constant dense<0.000000e+00> : vector<8xf32>
    %9 = vector.multi_reduction <add>, %5, %cst_9 [1] : vector<8x1024xf32> to vector<8xf32>
    %10 = vector.shape_cast %9 : vector<8xf32> to vector<8x1xf32>
    %11 = arith.addf %8, %10 : vector<8x1xf32>
    %c0_10 = arith.constant 0 : index
    %c0_11 = arith.constant 0 : index
    %c0_12 = arith.constant 0 : index
    %12 = vector.load %arg5[%c0_10, %c0_11, %c0_12] : memref<1x8x1xf32, #tpu.memory_space<vmem>>, vector<1x8x1xf32>
    %13 = vector.shape_cast %12 : vector<1x8x1xf32> to vector<8x1xf32>
    %14 = vector.shape_cast %11 : vector<8x1xf32> to vector<1x8x1xf32>
    tpu.vector_store %arg5[%c0_10, %c0_11, %c0_12], %14 {strides = array<i32>} : memref<1x8x1xf32, #tpu.memory_space<vmem>>, vector<1x8x1xf32>,
    %c0_13 = arith.constant 0 : index
    %c0_14 = arith.constant 0 : index
    %c0_15 = arith.constant 0 : index
    %15 = vector.load %arg6[%c0_13, %c0_14, %c0_15] : memref<1x8x1xf32, #tpu.memory_space<vmem>>, vector<1x8x1xf32>
    %16 = vector.shape_cast %15 : vector<1x8x1xf32> to vector<8x1xf32>
    %17 = arith.mulf %5, %5 : vector<8x1024xf32>
    %cst_16 = arith.constant dense<0.000000e+00> : vector<8xf32>
    %18 = vector.multi_reduction <add>, %17, %cst_16 [1] : vector<8x1024xf32> to vector<8xf32>
    %19 = vector.shape_cast %18 : vector<8xf32> to vector<8x1xf32>
    %20 = arith.addf %16, %19 : vector<8x1xf32>
    %c0_17 = arith.constant 0 : index
    %c0_18 = arith.constant 0 : index
    %c0_19 = arith.constant 0 : index
    %21 = vector.load %arg6[%c0_17, %c0_18, %c0_19] : memref<1x8x1xf32, #tpu.memory_space<vmem>>, vector<1x8x1xf32>
    %22 = vector.shape_cast %21 : vector<1x8x1xf32> to vector<8x1xf32>
    %23 = vector.shape_cast %20 : vector<8x1xf32> to vector<1x8x1xf32>
    tpu.vector_store %arg6[%c0_17, %c0_18, %c0_19], %23 {strides = array<i32>} : memref<1x8x1xf32, #tpu.memory_space<vmem>>, vector<1x8x1xf32>,
    return
  }
  func.func @transform_0(%arg0: i32, %arg1: i32) -> (i32, i32) {
    %c1_i32 = arith.constant 1 : i32
    %0 = arith.muli %arg0, %c1_i32 : i32
    %1 = arith.addi %0, %arg1 : i32
    %c0_i32 = arith.constant 0 : i32
    %c0_i32_0 = arith.constant 0 : i32
    return %c0_i32, %1 : i32, i32
  }
  func.func @transform_1(%arg0: i32, %arg1: i32) -> (i32, i32) {
    %c0_i32 = arith.constant 0 : i32
    %c0_i32_0 = arith.constant 0 : i32
    %c0_i32_1 = arith.constant 0 : i32
    return %c0_i32, %c0_i32_0 : i32, i32
  }
  func.func @transform_2(%arg0: i32, %arg1: i32) -> (i32, i32) {
    %c1_i32 = arith.constant 1 : i32
    %0 = arith.muli %arg0, %c1_i32 : i32
    %1 = arith.addi %0, %arg1 : i32
    %c0_i32 = arith.constant 0 : i32
    %c0_i32_0 = arith.constant 0 : i32
    return %c0_i32, %1 : i32, i32
  }
  func.func @transform_3(%arg0: i32, %arg1: i32) -> (i32, i32, i32) {
    %c0_i32 = arith.constant 0 : i32
    %c0_i32_0 = arith.constant 0 : i32
    %c0_i32_1 = arith.constant 0 : i32
    return %arg0, %c0_i32, %c0_i32_0 : i32, i32, i32
  }
  func.func @transform_4(%arg0: i32, %arg1: i32) -> (i32, i32, i32) {
    %c0_i32 = arith.constant 0 : i32
    %c0_i32_0 = arith.constant 0 : i32
    %c0_i32_1 = arith.constant 0 : i32
    return %arg0, %c0_i32, %c0_i32_0 : i32, i32, i32
  }
}

</mosaic_0001>

<llo_original>
// kernel: convt_bn_relu.3
$region0: #{convt_bn_relu.3}
  #allocation0 [shape = 'u32[]', space=smem, size = 0x4, offset = 0x4, fixed_abs, tag = 'smem constant byte address 0x4 - core index']
  #allocation1 [shape = 'u32[144,128]{1,0:T(1,128)}', space=vmem, size = 0x12000, scoped, tag = 'internal scratch']
  %s0 = inlined_call_operand.vmem [shape: f32[8,2048], index: 0, kind: input, shape index: {}]
  %s1 = inlined_call_operand.vmem [shape: f32[8,1], index: 1, kind: input, shape index: {}]
  %s2 = inlined_call_operand.vmem [shape: f32[8,1], index: 2, kind: input, shape index: {}]
  %s3 = inlined_call_operand.vmem [shape: f32[8,2048], index: 3, kind: output, shape index: {}]
  %s4 = sld [smem:[#allocation0]]
  $region45: #{convt_bn_relu.3} parent=0
    _
  %s6 = ssub.s32 1, %s4
  %s7 = scalar_select 0, %s6, %s4
  loop: start=0, step=1, limit=4
  $region2: #{convt_bn_relu.3} parent=0 // loop_pre_header
    _
  $region3: #{convt_bn_relu.3} parent=0 // loop_header
    %s9 = sphi 0, %s13
    %p10 = scmp.ge.s32.totalorder %s9, 4
    %s19 = sphi 0, %s21
    %s22 = sphi 0, %s19
    %s23 = sphi 0, %s22
    %s39 = sphi 0, %s23
    %s43 = sphi 0, %s43
    %s45 = sphi 0, %s43
    %s46 = sphi 0, %s45
    %s60 = sphi 0, %s46
    %s64 = sphi 0, %s64
    %s66 = sphi 0, %s64
    %s67 = sphi 0, %s66
    %s81 = sphi 0, %s67
    %s87 = sphi 0, %s89
    %s90 = sphi 0, %s87
    %s91 = sphi 0, %s90
    %s107 = sphi 0, %s91
  $region4: #{convt_bn_relu.3} parent=0 // loop_header_branch
    %12 = sbr.rel (%p10) target = $region8
  $region5: #{convt_bn_relu.3} parent=0 // loop_body
    %s14 = ssub.s32 %s9, 1
    %s15 = ssub.s32 %s9, 2
    %s16 = sadd.s32 %s9, 1
    %s17 = ssub.s32 %s9, %s16
    %p18 = scmp.eq.s32.totalorder %s17, 0
    %s20 = sadd.s32 %s19, 1
    %s21 = scalar_select %p18, %s19, %s20
    %p24 = pneg %p18
    %p25 = scmp.eq.s32.totalorder %s9, 1
    %p26 = por %p24, %p25
    %p27 = scmp.ne.s32.totalorder %s19, %s22
    %p28 = scmp.eq.s32.totalorder %s9, 0
    %p29 = por %p27, %p28
    %p30 = scmp.ne.s32.totalorder %s19, %s22
    %p31 = scmp.eq.s32.totalorder %s14, 1
    %p32 = por %p30, %p31
    %p33 = scmp.ne.s32.totalorder %s22, %s23
    %p34 = scmp.eq.s32.totalorder %s14, 0
    %p35 = por %p33, %p34
    %p36 = scmp.ne.s32.totalorder %s22, %s23
    %p37 = scmp.eq.s32.totalorder %s15, 1
    %p38 = por %p36, %p37
    %p40 = scmp.ne.s32.totalorder %s23, %s39
    %p41 = scmp.eq.s32.totalorder %s15, 0
    %p42 = por %p40, %p41
    %s44 = sadd.s32 %s43, 1
    %p47 = scmp.eq.s32.totalorder %s9, 1
    %p48 = scmp.ne.s32.totalorder %s43, %s45
    %p49 = scmp.eq.s32.totalorder %s9, 0
    %p50 = por %p48, %p49
    %p51 = scmp.ne.s32.totalorder %s43, %s45
    %p52 = scmp.eq.s32.totalorder %s14, 1
    %p53 = por %p51, %p52
    %p54 = scmp.ne.s32.totalorder %s45, %s46
    %p55 = scmp.eq.s32.totalorder %s14, 0
    %p56 = por %p54, %p55
    %p57 = scmp.ne.s32.totalorder %s45, %s46
    %p58 = scmp.eq.s32.totalorder %s15, 1
    %p59 = por %p57, %p58
    %p61 = scmp.ne.s32.totalorder %s46, %s60
    %p62 = scmp.eq.s32.totalorder %s15, 0
    %p63 = por %p61, %p62
    %s65 = sadd.s32 %s64, 1
    %p68 = scmp.eq.s32.totalorder %s9, 1
    %p69 = scmp.ne.s32.totalorder %s64, %s66
    %p70 = scmp.eq.s32.totalorder %s9, 0
    %p71 = por %p69, %p70
    %p72 = scmp.ne.s32.totalorder %s64, %s66
    %p73 = scmp.eq.s32.totalorder %s14, 1
    %p74 = por %p72, %p73
    %p75 = scmp.ne.s32.totalorder %s66, %s67
    %p76 = scmp.eq.s32.totalorder %s14, 0
    %p77 = por %p75, %p76
    %p78 = scmp.ne.s32.totalorder %s66, %s67
    %p79 = scmp.eq.s32.totalorder %s15, 1
    %p80 = por %p78, %p79
    %p82 = scmp.ne.s32.totalorder %s67, %s81
    %p83 = scmp.eq.s32.totalorder %s15, 0
    %p84 = por %p82, %p83
    %s85 = ssub.s32 %s9, %s16
    %p86 = scmp.eq.s32.totalorder %s85, 0
    %s88 = sadd.s32 %s87, 1
    %s89 = scalar_select %p86, %s87, %s88
    %p92 = pneg %p86
    %p93 = scmp.eq.s32.totalorder %s9, 1
    %p94 = por %p92, %p93
    %p95 = scmp.ne.s32.totalorder %s87, %s90
    %p96 = scmp.eq.s32.totalorder %s9, 0
    %p97 = por %p95, %p96
    %p98 = scmp.ne.s32.totalorder %s87, %s90
    %p99 = scmp.eq.s32.totalorder %s14, 1
    %p100 = por %p98, %p99
    %p101 = scmp.ne.s32.totalorder %s90, %s91
    %p102 = scmp.eq.s32.totalorder %s14, 0
    %p103 = por %p101, %p102
    %p104 = scmp.ne.s32.totalorder %s90, %s91
    %p105 = scmp.eq.s32.totalorder %s15, 1
    %p106 = por %p104, %p105
    %p108 = scmp.ne.s32.totalorder %s91, %s107
    %p109 = scmp.eq.s32.totalorder %s15, 0
    %p110 = por %p108, %p109
    %p111 = scmp.le.s32.totalorder 1, %s9
    %p112 = scmp.lt.s32.totalorder %s9, 3
    %p113 = pnand %p111, %p112
    %p114 = pneg %p113
    // Predicated region
    $region9: #{convt_bn_relu.3} parent=5 // pred_check
      _
    $region10: #{convt_bn_relu.3} parent=5 // pred_check_branch
      %116 = sbr.rel (%p113) target = $region12
    $region11: #{convt_bn_relu.3} parent=5 // pred_region
      %s117 = ssub.s32 %s9, 1
      // Predicated region
      $region13: #{convt_bn_relu.3} parent=11 // pred_check
        %p118 = pneg %p56
      $region14: #{convt_bn_relu.3} parent=11 // pred_check_branch
        %120 = sbr.rel (%p118) target = $region16
      $region15: #{convt_bn_relu.3} parent=11 // pred_region
        _
      $region16: #{convt_bn_relu.3} parent=11 // pred_fallthru
        _
      // Predicated region
      $region17: #{convt_bn_relu.3} parent=11 // pred_check
        %p121 = pneg %p77
      $region18: #{convt_bn_relu.3} parent=11 // pred_check_branch
        %123 = sbr.rel (%p121) target = $region20
      $region19: #{convt_bn_relu.3} parent=11 // pred_region
        _
      $region20: #{convt_bn_relu.3} parent=11 // pred_fallthru
        _
    $region12: #{convt_bn_relu.3} parent=5 // pred_fallthru
      _
    %p124 = scmp.lt.s32.totalorder %s9, 2
    // Predicated region
    $region21: #{convt_bn_relu.3} parent=5 // pred_check
      %p125 = pneg %p124
    $region22: #{convt_bn_relu.3} parent=5 // pred_check_branch
      %127 = sbr.rel (%p125) target = $region24
    $region23: #{convt_bn_relu.3} parent=5 // pred_region
      // Predicated region
      $region25: #{convt_bn_relu.3} parent=23 // pred_check
        %p128 = pneg %p29
      $region26: #{convt_bn_relu.3} parent=23 // pred_check_branch
        %130 = sbr.rel (%p128) target = $region28
      $region27: #{convt_bn_relu.3} parent=23 // pred_region
        %s131 = smul.u32 8, %s9
        %p132 = scmp.lt.s32.totalorder %s131, 15
        %s133 = scalar_select %p132, %s131, 15
        %s134 = smul.addr %s133, 8
        %s135 = scalar_lea.vmem %s0, %s134
        %s136 = smul.u32 8, %s9
      $region28: #{convt_bn_relu.3} parent=23 // pred_fallthru
        _
    $region24: #{convt_bn_relu.3} parent=5 // pred_fallthru
      _
    %p137 = scmp.le.s32.totalorder 1, %s9
    %p138 = scmp.lt.s32.totalorder %s9, 3
    %p139 = pnand %p137, %p138
    %p140 = pneg %p139
    // Predicated region
    $region29: #{convt_bn_relu.3} parent=5 // pred_check
      _
    $region30: #{convt_bn_relu.3} parent=5 // pred_check_branch
      %142 = sbr.rel (%p139) target = $region32
    $region31: #{convt_bn_relu.3} parent=5 // pred_region
      %s143 = ssub.s32 %s9, 1
      %s144 = smul.u32 8, %s14
      %p145 = scmp.lt.s32.totalorder %s144, 15
      %s146 = scalar_select %p145, %s144, 15
      %s147 = smul.addr %s146, 8
      %s148 = scalar_lea.vmem %s0, %s147
      %p149 = pneg %p35
      %p150 = pneg %p32
      %p151 = pneg %p56
      %p152 = pneg %p53
      %p153 = pneg %p77
      %p154 = pneg %p74
      %p155 = pneg %p103
      %p156 = pneg %p100
      %s157 = smul.u32 8, %s14
      %p158 = scmp.lt.s32.totalorder %s157, 15
      %s159 = scalar_select %p158, %s157, 15
      %s160 = smul.addr %s159, 8
      %s161 = scalar_lea.vmem %s3, %s160
      %s162 = smul.u32 8, %s14
      %p163 = scmp.lt.s32.totalorder %s162, 15
      %s164 = scalar_select %p163, %s162, 15
      %s165 = smul.addr %s164, 8
      %s166 = scalar_lea.vmem %s0, %s165
      %s167 = smul.u32 8, %s14
      %s168 = smul.u32 8, %s14
      %p169 = scmp.lt.s32.totalorder %s168, 15
      %s170 = scalar_select %p169, %s168, 15
      %s171 = smul.addr %s170, 8
      %s172 = scalar_lea.vmem %s3, %s171
      %s173 = smul.u32 8, %s14
      %v174 = vld [vmem:[%s166] sm:$0xff]
      %v175 = vld [vmem:[%s166 + $0x8] sm:$0xff]
      %v176 = vld [vmem:[%s166 + $0x10] sm:$0xff]
      %v177 = vld [vmem:[%s166 + $0x18] sm:$0xff]
      %v178 = vld [vmem:[%s166 + $0x20] sm:$0xff]
      %v179 = vld [vmem:[%s166 + $0x28] sm:$0xff]
      %v180 = vld [vmem:[%s166 + $0x30] sm:$0xff]
      %v181 = vld [vmem:[%s166 + $0x38] sm:$0xff]
      %v182 = vld [vmem:[%s1] sm:$0xff]
      %184 = vset.pattern.permute.xlu0 0
      %185 = vperm.xlu0 %184, %v182
      %v186 = vpop.permute.xlu0 %185
      %v188 = vmul.f32 %v174, %v186
      %v189 = vmul.f32 %v175, %v186
      %v190 = vmul.f32 %v176, %v186
      %v191 = vmul.f32 %v177, %v186
      %v192 = vmul.f32 %v178, %v186
      %v193 = vmul.f32 %v179, %v186
      %v194 = vmul.f32 %v180, %v186
      %v195 = vmul.f32 %v181, %v186
      %v196 = vld [vmem:[%s2] sm:$0xff]
      %198 = vset.pattern.permute.xlu0 0
      %199 = vperm.xlu0 %198, %v196
      %v200 = vpop.permute.xlu0 %199
      %v202 = vadd.f32 %v188, %v200
      %v203 = vadd.f32 %v189, %v200
      %v204 = vadd.f32 %v190, %v200
      %v205 = vadd.f32 %v191, %v200
      %v206 = vadd.f32 %v192, %v200
      %v207 = vadd.f32 %v193, %v200
      %v208 = vadd.f32 %v194, %v200
      %v209 = vadd.f32 %v195, %v200
      %v210 = vmax.f32 %v202, 0.0
      %v211 = vmax.f32 %v203, 0.0
      %v212 = vmax.f32 %v204, 0.0
      %v213 = vmax.f32 %v205, 0.0
      %v214 = vmax.f32 %v206, 0.0
      %v215 = vmax.f32 %v207, 0.0
      %v216 = vmax.f32 %v208, 0.0
      %v217 = vmax.f32 %v209, 0.0
      %218 = vst [vmem:[%s172] sm:$0xff] %v210
      %219 = vst [vmem:[%s172 + $0x8] sm:$0xff] %v211
      %220 = vst [vmem:[%s172 + $0x10] sm:$0xff] %v212
      %221 = vst [vmem:[%s172 + $0x18] sm:$0xff] %v213
      %222 = vst [vmem:[%s172 + $0x20] sm:$0xff] %v214
      %223 = vst [vmem:[%s172 + $0x28] sm:$0xff] %v215
      %224 = vst [vmem:[%s172 + $0x30] sm:$0xff] %v216
      %225 = vst [vmem:[%s172 + $0x38] sm:$0xff] %v217
      %s226 = smul.u32 8, %s14
      %p227 = scmp.lt.s32.totalorder %s226, 15
      %s228 = scalar_select %p227, %s226, 15
      %s229 = smul.addr %s228, 8
      %s230 = scalar_lea.vmem %s3, %s229
      // Predicated region
      $region33: #{convt_bn_relu.3} parent=31 // pred_check
        %p231 = pneg %p100
      $region34: #{convt_bn_relu.3} parent=31 // pred_check_branch
        %233 = sbr.rel (%p231) target = $region36
      $region35: #{convt_bn_relu.3} parent=31 // pred_region
        %s234 = smul.u32 8, %s14
      $region36: #{convt_bn_relu.3} parent=31 // pred_fallthru
        _
    $region32: #{convt_bn_relu.3} parent=5 // pred_fallthru
      _
    %p235 = scmp.le.s32.totalorder 2, %s9
    // Predicated region
    $region37: #{convt_bn_relu.3} parent=5 // pred_check
      %p236 = pneg %p235
    $region38: #{convt_bn_relu.3} parent=5 // pred_check_branch
      %238 = sbr.rel (%p236) target = $region40
    $region39: #{convt_bn_relu.3} parent=5 // pred_region
      %s239 = ssub.s32 %s9, 2
      // Predicated region
      $region41: #{convt_bn_relu.3} parent=39 // pred_check
        %p240 = pneg %p106
      $region42: #{convt_bn_relu.3} parent=39 // pred_check_branch
        %242 = sbr.rel (%p240) target = $region44
      $region43: #{convt_bn_relu.3} parent=39 // pred_region
        %s243 = smul.u32 8, %s15
        %p244 = scmp.lt.s32.totalorder %s243, 15
        %s245 = scalar_select %p244, %s243, 15
        %s246 = smul.addr %s245, 8
        %s247 = scalar_lea.vmem %s3, %s246
      $region44: #{convt_bn_relu.3} parent=39 // pred_fallthru
        _
    $region40: #{convt_bn_relu.3} parent=5 // pred_fallthru
      _
  $region6: #{convt_bn_relu.3} parent=0 // loop_footer
    %s13 = sadd.s32 1, %s9
  $region7: #{convt_bn_relu.3} parent=0 // loop_footer_branch
    %8 = sbr.rel target = $region3
  $region8: #{convt_bn_relu.3} parent=0 // loop_exit
    _

// kernel: convt_bn_relu.2
$region0: #{convt_bn_relu.2}
  #allocation0 [shape = 'u32[]', space=smem, size = 0x4, offset = 0x4, fixed_abs, tag = 'smem constant byte address 0x4 - core index']
  #allocation1 [shape = 'u32[144,128]{1,0:T(1,128)}', space=vmem, size = 0x12000, scoped, tag = 'internal scratch']
  %s0 = inlined_call_operand.vmem [shape: bf16[48,2048], index: 0, kind: input, shape index: {}]
  %s1 = inlined_call_operand.vmem [shape: bf16[8,48], index: 1, kind: input, shape index: {}]
  %s2 = inlined_call_operand.vmem [shape: f32[8,2048], index: 2, kind: output, shape index: {0}]
  %s3 = inlined_call_operand.vmem [shape: f32[2,8,1], index: 3, kind: output, shape index: {1}]
  %s4 = inlined_call_operand.vmem [shape: f32[2,8,1], index: 4, kind: output, shape index: {2}]
  %5 = xla_tuple %s2, %s3, %s4
  %s6 = sld [smem:[#allocation0]]
  $region84: #{convt_bn_relu.2} parent=0
    _
  %s8 = ssub.s32 1, %s6
  %s9 = scalar_select 0, %s8, %s6
  $region1: #{convt_bn_relu.2} parent=0
    #allocation2 [shape = 'u8[196608]{0}', space=vmem, size = 0x30000, scoped, tag = 'input window, operand 0']
    loop: start=0, step=1, limit=4
    $region2: #{convt_bn_relu.2} parent=1 // loop_pre_header
      _
    $region3: #{convt_bn_relu.2} parent=1 // loop_header
      %s11 = sphi 0, %s15
      %p12 = scmp.ge.s32.totalorder %s11, 4
      %s18 = sphi 0, %s30
      %s19 = sphi 0, %s26
      %s20 = sphi 0, %s18
      %s21 = sphi 0, %s19
      %s22 = sphi 0, %s20
      %s23 = sphi 0, %s21
      %s35 = sphi 0, %s37
      %s38 = sphi 0, %s35
      %s39 = sphi 0, %s38
      %s55 = sphi 0, %s39
      %s59 = sphi 0, %s59
      %s61 = sphi 0, %s59
      %s62 = sphi 0, %s61
      %s76 = sphi 0, %s62
      %s84 = sphi 0, %s86
      %s87 = sphi 0, %s84
      %s88 = sphi 0, %s87
      %s104 = sphi 0, %s88
      %s110 = sphi 0, %s112
      %s113 = sphi 0, %s110
      %s114 = sphi 0, %s113
      %s130 = sphi 0, %s114
      %s136 = sphi 0, %s138
      %s139 = sphi 0, %s136
      %s140 = sphi 0, %s139
      %s156 = sphi 0, %s140
    $region4: #{convt_bn_relu.2} parent=1 // loop_header_branch
      %14 = sbr.rel (%p12) target = $region8
    $region5: #{convt_bn_relu.2} parent=1 // loop_body
      %s16 = ssub.s32 %s11, 1
      %s17 = ssub.s32 %s11, 2
      %s24 = sadd.s32 1, %s19
      %p25 = scmp.ge.s32.totalorder %s24, 1
      %s26 = scalar_select %p25, 0, %s24
      %s27 = sadd.s32 1, %s18
      %s28 = scalar_select %p25, %s27, %s18
      %p29 = scmp.ge.s32.totalorder %s28, 2
      %s30 = scalar_select %p29, 0, %s28
      %s31 = sadd.s32 %s18, %s19
      %s32 = sadd.s32 %s30, %s26
      %s33 = ssub.s32 %s31, %s32
      %p34 = scmp.eq.s32.totalorder %s33, 0
      %s36 = sadd.s32 %s35, 1
      %s37 = scalar_select %p34, %s35, %s36
      %p40 = pneg %p34
      %p41 = scmp.eq.s32.totalorder %s11, 1
      %p42 = por %p40, %p41
      %p43 = scmp.ne.s32.totalorder %s35, %s38
      %p44 = scmp.eq.s32.totalorder %s11, 0
      %p45 = por %p43, %p44
      %p46 = scmp.ne.s32.totalorder %s35, %s38
      %p47 = scmp.eq.s32.totalorder %s16, 1
      %p48 = por %p46, %p47
      %p49 = scmp.ne.s32.totalorder %s38, %s39
      %p50 = scmp.eq.s32.totalorder %s16, 0
      %p51 = por %p49, %p50
      %p52 = scmp.ne.s32.totalorder %s38, %s39
      %p53 = scmp.eq.s32.totalorder %s17, 1
      %p54 = por %p52, %p53
      %p56 = scmp.ne.s32.totalorder %s39, %s55
      %p57 = scmp.eq.s32.totalorder %s17, 0
      %p58 = por %p56, %p57
      %s60 = sadd.s32 %s59, 1
      %p63 = scmp.eq.s32.totalorder %s11, 1
      %p64 = scmp.ne.s32.totalorder %s59, %s61
      %p65 = scmp.eq.s32.totalorder %s11, 0
      %p66 = por %p64, %p65
      %p67 = scmp.ne.s32.totalorder %s59, %s61
      %p68 = scmp.eq.s32.totalorder %s16, 1
      %p69 = por %p67, %p68
      %p70 = scmp.ne.s32.totalorder %s61, %s62
      %p71 = scmp.eq.s32.totalorder %s16, 0
      %p72 = por %p70, %p71
      %p73 = scmp.ne.s32.totalorder %s61, %s62
      %p74 = scmp.eq.s32.totalorder %s17, 1
      %p75 = por %p73, %p74
      %p77 = scmp.ne.s32.totalorder %s62, %s76
      %p78 = scmp.eq.s32.totalorder %s17, 0
      %p79 = por %p77, %p78
      %s80 = sadd.s32 %s18, %s19
      %s81 = sadd.s32 %s30, %s26
      %s82 = ssub.s32 %s80, %s81
      %p83 = scmp.eq.s32.totalorder %s82, 0
      %s85 = sadd.s32 %s84, 1
      %s86 = scalar_select %p83, %s84, %s85
      %p89 = pneg %p83
      %p90 = scmp.eq.s32.totalorder %s11, 1
      %p91 = por %p89, %p90
      %p92 = scmp.ne.s32.totalorder %s84, %s87
      %p93 = scmp.eq.s32.totalorder %s11, 0
      %p94 = por %p92, %p93
      %p95 = scmp.ne.s32.totalorder %s84, %s87
      %p96 = scmp.eq.s32.totalorder %s16, 1
      %p97 = por %p95, %p96
      %p98 = scmp.ne.s32.totalorder %s87, %s88
      %p99 = scmp.eq.s32.totalorder %s16, 0
      %p100 = por %p98, %p99
      %p101 = scmp.ne.s32.totalorder %s87, %s88
      %p102 = scmp.eq.s32.totalorder %s17, 1
      %p103 = por %p101, %p102
      %p105 = scmp.ne.s32.totalorder %s88, %s104
      %p106 = scmp.eq.s32.totalorder %s17, 0
      %p107 = por %p105, %p106
      %s108 = ssub.s32 %s18, %s30
      %p109 = scmp.eq.s32.totalorder %s108, 0
      %s111 = sadd.s32 %s110, 1
      %s112 = scalar_select %p109, %s110, %s111
      %p115 = pneg %p109
      %p116 = scmp.eq.s32.totalorder %s11, 1
      %p117 = por %p115, %p116
      %p118 = scmp.ne.s32.totalorder %s110, %s113
      %p119 = scmp.eq.s32.totalorder %s11, 0
      %p120 = por %p118, %p119
      %p121 = scmp.ne.s32.totalorder %s110, %s113
      %p122 = scmp.eq.s32.totalorder %s16, 1
      %p123 = por %p121, %p122
      %p124 = scmp.ne.s32.totalorder %s113, %s114
      %p125 = scmp.eq.s32.totalorder %s16, 0
      %p126 = por %p124, %p125
      %p127 = scmp.ne.s32.totalorder %s113, %s114
      %p128 = scmp.eq.s32.totalorder %s17, 1
      %p129 = por %p127, %p128
      %p131 = scmp.ne.s32.totalorder %s114, %s130
      %p132 = scmp.eq.s32.totalorder %s17, 0
      %p133 = por %p131, %p132
      %s134 = ssub.s32 %s18, %s30
      %p135 = scmp.eq.s32.totalorder %s134, 0
      %s137 = sadd.s32 %s136, 1
      %s138 = scalar_select %p135, %s136, %s137
      %p141 = pneg %p135
      %p142 = scmp.eq.s32.totalorder %s11, 1
      %p143 = por %p141, %p142
      %p144 = scmp.ne.s32.totalorder %s136, %s139
      %p145 = scmp.eq.s32.totalorder %s11, 0
      %p146 = por %p144, %p145
      %p147 = scmp.ne.s32.totalorder %s136, %s139
      %p148 = scmp.eq.s32.totalorder %s16, 1
      %p149 = por %p147, %p148
      %p150 = scmp.ne.s32.totalorder %s139, %s140
      %p151 = scmp.eq.s32.totalorder %s16, 0
      %p152 = por %p150, %p151
      %p153 = scmp.ne.s32.totalorder %s139, %s140
      %p154 = scmp.eq.s32.totalorder %s17, 1
      %p155 = por %p153, %p154
      %p157 = scmp.ne.s32.totalorder %s140, %s156
      %p158 = scmp.eq.s32.totalorder %s17, 0
      %p159 = por %p157, %p158
      %p160 = scmp.le.s32.totalorder 1, %s11
      %p161 = scmp.lt.s32.totalorder %s11, 3
      %p162 = pnand %p160, %p161
      %p163 = pneg %p162
      // Predicated region
      $region9: #{convt_bn_relu.2} parent=5 // pred_check
        _
      $region10: #{convt_bn_relu.2} parent=5 // pred_check_branch
        %165 = sbr.rel (%p162) target = $region12
      $region11: #{convt_bn_relu.2} parent=5 // pred_region
        %s166 = ssub.s32 %s11, 1
        // Predicated region
        $region13: #{convt_bn_relu.2} parent=11 // pred_check
          %p167 = pneg %p72
        $region14: #{convt_bn_relu.2} parent=11 // pred_check_branch
          %169 = sbr.rel (%p167) target = $region16
        $region15: #{convt_bn_relu.2} parent=11 // pred_region
          _
        $region16: #{convt_bn_relu.2} parent=11 // pred_fallthru
          _
      $region12: #{convt_bn_relu.2} parent=5 // pred_fallthru
        _
      %p170 = scmp.lt.s32.totalorder %s11, 2
      // Predicated region
      $region17: #{convt_bn_relu.2} parent=5 // pred_check
        %p171 = pneg %p170
      $region18: #{convt_bn_relu.2} parent=5 // pred_check_branch
        %173 = sbr.rel (%p171) target = $region20
      $region19: #{convt_bn_relu.2} parent=5 // pred_region
        // Predicated region
        $region21: #{convt_bn_relu.2} parent=19 // pred_check
          %p174 = pneg %p45
        $region22: #{convt_bn_relu.2} parent=19 // pred_check_branch
          %176 = sbr.rel (%p174) target = $region24
        $region23: #{convt_bn_relu.2} parent=19 // pred_region
          %s177 = sand.u32 %s35, 1
          %s178 = sand.u32 %s35, 1
          %s179 = smul.addr %s178, 192
          %s180 = scalar_lea.vmem [#allocation2], %s179
          %s181 = sadd.s32 %s18, %s19
          %s182 = smul.u32 8, %s181
          %s183 = smul.addr %s182, 4
          %s184 = scalar_lea.vmem %s0, %s183
          // Predicated region
          $region25: #{convt_bn_relu.2} parent=23 // pred_check
            _
          $region26: #{convt_bn_relu.2} parent=23 // pred_check_branch
            %186 = sbr.rel (0) target = $region28
          $region27: #{convt_bn_relu.2} parent=23 // pred_region
            // Predicated region
            $region29: #{convt_bn_relu.2} parent=27 // pred_check
              _
            $region30: #{convt_bn_relu.2} parent=27 // pred_check_branch
              %188 = sbr.rel (0) target = $region32
            $region31: #{convt_bn_relu.2} parent=27 // pred_region
              loop: start=0, step=1, limit=1
              $region33: #{convt_bn_relu.2} parent=31 // loop_pre_header
                _
              $region34: #{convt_bn_relu.2} parent=31 // loop_header
                %s190 = sphi 0, %s194
                %p191 = scmp.ge.s32.totalorder %s190, 1
                %s195 = sphi %s184, %s184
                %s196 = sphi %s180, %s180
              $region35: #{convt_bn_relu.2} parent=31 // loop_header_branch
                %193 = sbr.rel (%p191) target = $region39
              $region36: #{convt_bn_relu.2} parent=31 // loop_body
                %v197 = vld [vmem:[%s195] sm:$0xff]
                %198 = vst [vmem:[%s196] sm:$0xff] %v197
                %v199 = vld [vmem:[%s195 + $0x8] sm:$0xff]
                %200 = vst [vmem:[%s196 + $0x8] sm:$0xff] %v199
                %v201 = vld [vmem:[%s195 + $0x10] sm:$0xff]
                %202 = vst [vmem:[%s196 + $0x10] sm:$0xff] %v201
                %v203 = vld [vmem:[%s195 + $0x18] sm:$0xff]
                %204 = vst [vmem:[%s196 + $0x18] sm:$0xff] %v203
                %v205 = vld [vmem:[%s195 + $0x40] sm:$0xff]
                %206 = vst [vmem:[%s196 + $0x20] sm:$0xff] %v205
                %v207 = vld [vmem:[%s195 + $0x48] sm:$0xff]
                %208 = vst [vmem:[%s196 + $0x28] sm:$0xff] %v207
                %v209 = vld [vmem:[%s195 + $0x50] sm:$0xff]
                %210 = vst [vmem:[%s196 + $0x30] sm:$0xff] %v209
                %v211 = vld [vmem:[%s195 + $0x58] sm:$0xff]
                %212 = vst [vmem:[%s196 + $0x38] sm:$0xff] %v211
                %v213 = vld [vmem:[%s195 + $0x80] sm:$0xff]
                %214 = vst [vmem:[%s196 + $0x40] sm:$0xff] %v213
                %v215 = vld [vmem:[%s195 + $0x88] sm:$0xff]
                %216 = vst [vmem:[%s196 + $0x48] sm:$0xff] %v215
                %v217 = vld [vmem:[%s195 + $0x90] sm:$0xff]
                %218 = vst [vmem:[%s196 + $0x50] sm:$0xff] %v217
                %v219 = vld [vmem:[%s195 + $0x98] sm:$0xff]
                %220 = vst [vmem:[%s196 + $0x58] sm:$0xff] %v219
                %v221 = vld [vmem:[%s195 + $0xc0] sm:$0xff]
                %222 = vst [vmem:[%s196 + $0x60] sm:$0xff] %v221
                %v223 = vld [vmem:[%s195 + $0xc8] sm:$0xff]
                %224 = vst [vmem:[%s196 + $0x68] sm:$0xff] %v223
                %v225 = vld [vmem:[%s195 + $0xd0] sm:$0xff]
                %226 = vst [vmem:[%s196 + $0x70] sm:$0xff] %v225
                %v227 = vld [vmem:[%s195 + $0xd8] sm:$0xff]
                %228 = vst [vmem:[%s196 + $0x78] sm:$0xff] %v227
                %v229 = vld [vmem:[%s195 + $0x100] sm:$0xff]
                %230 = vst [vmem:[%s196 + $0x80] sm:$0xff] %v229
                %v231 = vld [vmem:[%s195 + $0x108] sm:$0xff]
                %232 = vst [vmem:[%s196 + $0x88] sm:$0xff] %v231
                %v233 = vld [vmem:[%s195 + $0x110] sm:$0xff]
                %234 = vst [vmem:[%s196 + $0x90] sm:$0xff] %v233
                %v235 = vld [vmem:[%s195 + $0x118] sm:$0xff]
                %236 = vst [vmem:[%s196 + $0x98] sm:$0xff] %v235
                %v237 = vld [vmem:[%s195 + $0x140] sm:$0xff]
                %238 = vst [vmem:[%s196 + $0xa0] sm:$0xff] %v237
                %v239 = vld [vmem:[%s195 + $0x148] sm:$0xff]
                %240 = vst [vmem:[%s196 + $0xa8] sm:$0xff] %v239
                %v241 = vld [vmem:[%s195 + $0x150] sm:$0xff]
                %242 = vst [vmem:[%s196 + $0xb0] sm:$0xff] %v241
                %v243 = vld [vmem:[%s195 + $0x158] sm:$0xff]
                %244 = vst [vmem:[%s196 + $0xb8] sm:$0xff] %v243
              $region37: #{convt_bn_relu.2} parent=31 // loop_footer
                %s194 = sadd.s32 1, %s190
              $region38: #{convt_bn_relu.2} parent=31 // loop_footer_branch
                %189 = sbr.rel target = $region34
              $region39: #{convt_bn_relu.2} parent=31 // loop_exit
                _
            $region32: #{convt_bn_relu.2} parent=27 // pred_fallthru
              _
            // Predicated region
            $region40: #{convt_bn_relu.2} parent=27 // pred_check
              _
            $region41: #{convt_bn_relu.2} parent=27 // pred_check_branch
              %246 = sbr.rel target = $region43
            $region42: #{convt_bn_relu.2} parent=27 // pred_region
              _
            $region43: #{convt_bn_relu.2} parent=27 // pred_fallthru
              _
          $region28: #{convt_bn_relu.2} parent=23 // pred_fallthru
            _
          %247 = vnop
        $region24: #{convt_bn_relu.2} parent=19 // pred_fallthru
          _
      $region20: #{convt_bn_relu.2} parent=5 // pred_fallthru
        _
      %p248 = scmp.le.s32.totalorder 1, %s11
      %p249 = scmp.lt.s32.totalorder %s11, 3
      %p250 = pnand %p248, %p249
      %p251 = pneg %p250
      // Predicated region
      $region44: #{convt_bn_relu.2} parent=5 // pred_check
        _
      $region45: #{convt_bn_relu.2} parent=5 // pred_check_branch
        %253 = sbr.rel (%p250) target = $region47
      $region46: #{convt_bn_relu.2} parent=5 // pred_region
        %s254 = ssub.s32 %s11, 1
        %s255 = sand.u32 %s38, 1
        %s256 = sand.u32 %s38, 1
        %s257 = smul.addr %s256, 192
        %s258 = scalar_lea.vmem [#allocation2], %s257
        // Predicated region
        $region48: #{convt_bn_relu.2} parent=46 // pred_check
          %p259 = pneg %p51
        $region49: #{convt_bn_relu.2} parent=46 // pred_check_branch
          %261 = sbr.rel (%p259) target = $region51
        $region50: #{convt_bn_relu.2} parent=46 // pred_region
          _
        $region51: #{convt_bn_relu.2} parent=46 // pred_fallthru
          _
        %s262 = sand.u32 %s38, 1
        %s263 = sand.u32 %s38, 1
        %s264 = smul.addr %s263, 192
        %s265 = scalar_lea.vmem [#allocation2], %s264
        %p266 = pneg %p51
        %p267 = pneg %p48
        %p268 = pneg %p72
        %p269 = pneg %p69
        %p270 = pneg %p100
        %p271 = pneg %p97
        %s272 = sadd.s32 %s20, %s21
        %s273 = smul.u32 8, %s272
        %p274 = scmp.lt.s32.totalorder %s273, 15
        %s275 = scalar_select %p274, %s273, 15
        %s276 = smul.addr %s275, 8
        %s277 = scalar_lea.vmem %s2, %s276
        %p278 = pneg %p126
        %p279 = pneg %p123
        %p280 = scmp.lt.s32.totalorder %s20, 1
        %s281 = scalar_select %p280, %s20, 1
        %s282 = smul.addr %s281, 8
        %s283 = scalar_lea.vmem %s3, %s282
        %p284 = pneg %p152
        %p285 = pneg %p149
        %p286 = scmp.lt.s32.totalorder %s20, 1
        %s287 = scalar_select %p286, %s20, 1
        %s288 = smul.addr %s287, 8
        %s289 = scalar_lea.vmem %s4, %s288
        %s290 = sadd.s32 %s20, %s21
        %s291 = smul.u32 8, %s290
        %s292 = sadd.s32 %s20, %s21
        %s293 = smul.u32 8, %s292
        %p294 = scmp.lt.s32.totalorder %s293, 15
        %s295 = scalar_select %p294, %s293, 15
        %s296 = smul.addr %s295, 8
        %s297 = scalar_lea.vmem %s2, %s296
        %s298 = sadd.s32 %s20, %s21
        %s299 = smul.u32 8, %s298
        %p300 = scmp.lt.s32.totalorder %s20, 1
        %s301 = scalar_select %p300, %s20, 1
        %s302 = smul.addr %s301, 8
        %s303 = scalar_lea.vmem %s3, %s302
        %p304 = scmp.lt.s32.totalorder %s20, 1
        %s305 = scalar_select %p304, %s20, 1
        %s306 = smul.addr %s305, 8
        %s307 = scalar_lea.vmem %s4, %s306
        %p309 = scmp.eq.s32.totalorder %s21, 0
        // Predicated region
        $region52: #{convt_bn_relu.2} parent=46 // pred_check
          %p310 = pneg %p309
        $region53: #{convt_bn_relu.2} parent=46 // pred_check_branch
          %312 = sbr.rel (%p310) target = $region55
        $region54: #{convt_bn_relu.2} parent=46 // pred_region
          %vm313 = vcmask 7168
          %314 = vst.msk [vmem:[%s303] sm:$0xff] %vm313, 0.0
          %315 = vst.msk [vmem:[%s307] sm:$0xff] %vm313, 0.0
        $region55: #{convt_bn_relu.2} parent=46 // pred_fallthru
          _
        %v316 = vld [vmem:[%s1] sm:$0xf]
        %v317 = vld [vmem:[%s258] sm:$0xff]
        %v318 = vld [vmem:[%s258 + $0x8] sm:$0xff]
        %v319 = vld [vmem:[%s258 + $0x10] sm:$0xff]
        %v320 = vld [vmem:[%s258 + $0x18] sm:$0xff]
        %v321 = vld [vmem:[%s258 + $0x20] sm:$0xff]
        %v322 = vld [vmem:[%s258 + $0x28] sm:$0xff]
        %v323 = vld [vmem:[%s258 + $0x30] sm:$0xff]
        %v324 = vld [vmem:[%s258 + $0x38] sm:$0xff]
        %v325 = vld [vmem:[%s258 + $0x40] sm:$0xff]
        %v326 = vld [vmem:[%s258 + $0x48] sm:$0xff]
        %v327 = vld [vmem:[%s258 + $0x50] sm:$0xff]
        %v328 = vld [vmem:[%s258 + $0x58] sm:$0xff]
        %v329 = vld [vmem:[%s258 + $0x60] sm:$0xff]
        %v330 = vld [vmem:[%s258 + $0x68] sm:$0xff]
        %v331 = vld [vmem:[%s258 + $0x70] sm:$0xff]
        %v332 = vld [vmem:[%s258 + $0x78] sm:$0xff]
        %v333 = vld [vmem:[%s258 + $0x80] sm:$0xff]
        %v334 = vld [vmem:[%s258 + $0x88] sm:$0xff]
        %v335 = vld [vmem:[%s258 + $0x90] sm:$0xff]
        %v336 = vld [vmem:[%s258 + $0x98] sm:$0xff]
        %v337 = vld [vmem:[%s258 + $0xa0] sm:$0xff]
        %v338 = vld [vmem:[%s258 + $0xa8] sm:$0xff]
        %v339 = vld [vmem:[%s258 + $0xb0] sm:$0xff]
        %v340 = vld [vmem:[%s258 + $0xb8] sm:$0xff]
        %v365 = vunpack.c.l.b16 %v317
        %v366 = vunpack.c.h.b16 %v317
        %v367 = vunpack.c.l.b16 %v318
        %v368 = vunpack.c.h.b16 %v318
        %v369 = vunpack.c.l.b16 %v319
        %v370 = vunpack.c.h.b16 %v319
        %v371 = vunpack.c.l.b16 %v320
        %v372 = vunpack.c.h.b16 %v320
        %v373 = vunpack.c.l.b16 %v321
        %v374 = vunpack.c.h.b16 %v321
        %v375 = vunpack.c.l.b16 %v322
        %v376 = vunpack.c.h.b16 %v322
        %v377 = vunpack.c.l.b16 %v323
        %v378 = vunpack.c.h.b16 %v323
        %v379 = vunpack.c.l.b16 %v324
        %v380 = vunpack.c.h.b16 %v324
        %v381 = vunpack.c.l.b16 %v325
        %v382 = vunpack.c.h.b16 %v325
        %v383 = vunpack.c.l.b16 %v326
        %v384 = vunpack.c.h.b16 %v326
        %v385 = vunpack.c.l.b16 %v327
        %v386 = vunpack.c.h.b16 %v327
        %v387 = vunpack.c.l.b16 %v328
        %v388 = vunpack.c.h.b16 %v328
        %v389 = vunpack.c.l.b16 %v329
        %v390 = vunpack.c.h.b16 %v329
        %v391 = vunpack.c.l.b16 %v330
        %v392 = vunpack.c.h.b16 %v330
        %v393 = vunpack.c.l.b16 %v331
        %v394 = vunpack.c.h.b16 %v331
        %v395 = vunpack.c.l.b16 %v332
        %v396 = vunpack.c.h.b16 %v332
        %v397 = vunpack.c.l.b16 %v333
        %v398 = vunpack.c.h.b16 %v333
        %v399 = vunpack.c.l.b16 %v334
        %v400 = vunpack.c.h.b16 %v334
        %v401 = vunpack.c.l.b16 %v335
        %v402 = vunpack.c.h.b16 %v335
        %v403 = vunpack.c.l.b16 %v336
        %v404 = vunpack.c.h.b16 %v336
        %v405 = vunpack.c.l.b16 %v337
        %v406 = vunpack.c.h.b16 %v337
        %v407 = vunpack.c.l.b16 %v338
        %v408 = vunpack.c.h.b16 %v338
        %v409 = vunpack.c.l.b16 %v339
        %v410 = vunpack.c.h.b16 %v339
        %v411 = vunpack.c.l.b16 %v340
        %v412 = vunpack.c.h.b16 %v340
        %v413 = vpack.c.b16 %v373, %v365
        %v414 = vpack.c.b16 %v374, %v366
        %v415 = vpack.c.b16 %v375, %v367
        %v416 = vpack.c.b16 %v376, %v368
        %v417 = vpack.c.b16 %v377, %v369
        %v418 = vpack.c.b16 %v378, %v370
        %v419 = vpack.c.b16 %v379, %v371
        %v420 = vpack.c.b16 %v380, %v372
        %v421 = vpack.c.b16 %v389, %v381
        %v422 = vpack.c.b16 %v390, %v382
        %v423 = vpack.c.b16 %v391, %v383
        %v424 = vpack.c.b16 %v392, %v384
        %v425 = vpack.c.b16 %v393, %v385
        %v426 = vpack.c.b16 %v394, %v386
        %v427 = vpack.c.b16 %v395, %v387
        %v428 = vpack.c.b16 %v396, %v388
        %v429 = vpack.c.b16 %v405, %v397
        %v430 = vpack.c.b16 %v406, %v398
        %v431 = vpack.c.b16 %v407, %v399
        %v432 = vpack.c.b16 %v408, %v400
        %v433 = vpack.c.b16 %v409, %v401
        %v434 = vpack.c.b16 %v410, %v402
        %v435 = vpack.c.b16 %v411, %v403
        %v436 = vpack.c.b16 %v412, %v404
        %vm461 = vcmask 392192
        %v463 = vsel %vm461, %v316, 0
        %465 = vmatprep.subr.bf16.mxu0 %v414
        %466 = vmatpush1.bf16.msra.mxu0 %v413
        %467 = vmatprep.subr.bf16.mxu0 %v422
        %468 = vmatpush1.bf16.msra.mxu0 %v421
        %469 = vmatprep.subr.bf16.mxu0 %v430
        %470 = vmatpush1.bf16.msra.mxu0 %v429
        %471 = vmatprep.subr.bf16.mxu0 0
        %472 = vmatpush1.bf16.msra.mxu0 0
        %473 = vmatprep.subr.bf16.mxu0 0
        %474 = vmatpush1.bf16.msra.mxu0 0
        %475 = vmatprep.subr.bf16.mxu0 0
        %476 = vmatpush1.bf16.msra.mxu0 0
        %477 = vmatprep.subr.bf16.mxu0 0
        %478 = vmatpush1.bf16.msra.mxu0 0
        %479 = vmatprep.subr.bf16.mxu0 0
        %480 = vmatpush1.bf16.msra.mxu0 0
        %481 = vmatprep.subr.bf16.mxu0 0
        %482 = vmatpush1.bf16.msra.mxu0 0
        %483 = vmatprep.subr.bf16.mxu0 0
        %484 = vmatpush1.bf16.msra.mxu0 0
        %485 = vmatprep.subr.bf16.mxu0 0
        %486 = vmatpush1.bf16.msra.mxu0 0
        %487 = vmatprep.subr.bf16.mxu0 0
        %488 = vmatpush1.bf16.msra.mxu0 0
        %489 = vmatprep.subr.bf16.mxu0 0
        %490 = vmatpush1.bf16.msra.mxu0 0
        %491 = vmatprep.subr.bf16.mxu0 0
        %492 = vmatpush1.bf16.msra.mxu0 0
        %493 = vmatprep.subr.bf16.mxu0 0
        %494 = vmatpush1.bf16.msra.mxu0 0
        %495 = vmatprep.subr.bf16.mxu0 0
        %496 = vmatpush1.bf16.msra.mxu0 0
        %497 = vmatprep.mubr.bf16.mxu0 0
        %498 = vmatmul.mubr.bf16.gmra.mrb[0].mxu0 %v463
        %v499 = vpop.f32.mrb[0].mxu0
        %v500 = vadd.f32 0.0, %v499
        %v501 = vpop.f32.mrb[0].mxu0
        %v502 = vadd.f32 0.0, %v501
        %v503 = vpop.f32.mrb[0].mxu0
        %v504 = vpop.f32.mrb[0].mxu0
        %505 = vdwg.mxu0
        %506 = vmatprep.subr.bf16.mxu0 %v416
        %507 = vmatpush1.bf16.msra.mxu0 %v415
        %508 = vmatprep.subr.bf16.mxu0 %v424
        %509 = vmatpush1.bf16.msra.mxu0 %v423
        %510 = vmatprep.subr.bf16.mxu0 %v432
        %511 = vmatpush1.bf16.msra.mxu0 %v431
        %512 = vmatprep.subr.bf16.mxu0 0
        %513 = vmatpush1.bf16.msra.mxu0 0
        %514 = vmatprep.subr.bf16.mxu0 0
        %515 = vmatpush1.bf16.msra.mxu0 0
        %516 = vmatprep.subr.bf16.mxu0 0
        %517 = vmatpush1.bf16.msra.mxu0 0
        %518 = vmatprep.subr.bf16.mxu0 0
        %519 = vmatpush1.bf16.msra.mxu0 0
        %520 = vmatprep.subr.bf16.mxu0 0
        %521 = vmatpush1.bf16.msra.mxu0 0
        %522 = vmatprep.subr.bf16.mxu0 0
        %523 = vmatpush1.bf16.msra.mxu0 0
        %524 = vmatprep.subr.bf16.mxu0 0
        %525 = vmatpush1.bf16.msra.mxu0 0
        %526 = vmatprep.subr.bf16.mxu0 0
        %527 = vmatpush1.bf16.msra.mxu0 0
        %528 = vmatprep.subr.bf16.mxu0 0
        %529 = vmatpush1.bf16.msra.mxu0 0
        %530 = vmatprep.subr.bf16.mxu0 0
        %531 = vmatpush1.bf16.msra.mxu0 0
        %532 = vmatprep.subr.bf16.mxu0 0
        %533 = vmatpush1.bf16.msra.mxu0 0
        %534 = vmatprep.subr.bf16.mxu0 0
        %535 = vmatpush1.bf16.msra.mxu0 0
        %536 = vmatprep.subr.bf16.mxu0 0
        %537 = vmatpush1.bf16.msra.mxu0 0
        %538 = vmatprep.mubr.bf16.mxu0 0
        %539 = vmatmul.mubr.bf16.gmra.mrb[0].mxu0 %v463
        %v540 = vpop.f32.mrb[0].mxu0
        %v541 = vadd.f32 0.0, %v540
        %v542 = vpop.f32.mrb[0].mxu0
        %v543 = vadd.f32 0.0, %v542
        %v544 = vpop.f32.mrb[0].mxu0
        %v545 = vpop.f32.mrb[0].mxu0
        %546 = vdwg.mxu0
        %547 = vmatprep.subr.bf16.mxu0 %v418
        %548 = vmatpush1.bf16.msra.mxu0 %v417
        %549 = vmatprep.subr.bf16.mxu0 %v426
        %550 = vmatpush1.bf16.msra.mxu0 %v425
        %551 = vmatprep.subr.bf16.mxu0 %v434
        %552 = vmatpush1.bf16.msra.mxu0 %v433
        %553 = vmatprep.subr.bf16.mxu0 0
        %554 = vmatpush1.bf16.msra.mxu0 0
        %555 = vmatprep.subr.bf16.mxu0 0
        %556 = vmatpush1.bf16.msra.mxu0 0
        %557 = vmatprep.subr.bf16.mxu0 0
        %558 = vmatpush1.bf16.msra.mxu0 0
        %559 = vmatprep.subr.bf16.mxu0 0
        %560 = vmatpush1.bf16.msra.mxu0 0
        %561 = vmatprep.subr.bf16.mxu0 0
        %562 = vmatpush1.bf16.msra.mxu0 0
        %563 = vmatprep.subr.bf16.mxu0 0
        %564 = vmatpush1.bf16.msra.mxu0 0
        %565 = vmatprep.subr.bf16.mxu0 0
        %566 = vmatpush1.bf16.msra.mxu0 0
        %567 = vmatprep.subr.bf16.mxu0 0
        %568 = vmatpush1.bf16.msra.mxu0 0
        %569 = vmatprep.subr.bf16.mxu0 0
        %570 = vmatpush1.bf16.msra.mxu0 0
        %571 = vmatprep.subr.bf16.mxu0 0
        %572 = vmatpush1.bf16.msra.mxu0 0
        %573 = vmatprep.subr.bf16.mxu0 0
        %574 = vmatpush1.bf16.msra.mxu0 0
        %575 = vmatprep.subr.bf16.mxu0 0
        %576 = vmatpush1.bf16.msra.mxu0 0
        %577 = vmatprep.subr.bf16.mxu0 0
        %578 = vmatpush1.bf16.msra.mxu0 0
        %579 = vmatprep.mubr.bf16.mxu0 0
        %580 = vmatmul.mubr.bf16.gmra.mrb[0].mxu0 %v463
        %v581 = vpop.f32.mrb[0].mxu0
        %v582 = vadd.f32 0.0, %v581
        %v583 = vpop.f32.mrb[0].mxu0
        %v584 = vadd.f32 0.0, %v583
        %v585 = vpop.f32.mrb[0].mxu0
        %v586 = vpop.f32.mrb[0].mxu0
        %587 = vdwg.mxu0
        %588 = vmatprep.subr.bf16.mxu0 %v420
        %589 = vmatpush1.bf16.msra.mxu0 %v419
        %590 = vmatprep.subr.bf16.mxu0 %v428
        %591 = vmatpush1.bf16.msra.mxu0 %v427
        %592 = vmatprep.subr.bf16.mxu0 %v436
        %593 = vmatpush1.bf16.msra.mxu0 %v435
        %594 = vmatprep.subr.bf16.mxu0 0
        %595 = vmatpush1.bf16.msra.mxu0 0
        %596 = vmatprep.subr.bf16.mxu0 0
        %597 = vmatpush1.bf16.msra.mxu0 0
        %598 = vmatprep.subr.bf16.mxu0 0
        %599 = vmatpush1.bf16.msra.mxu0 0
        %600 = vmatprep.subr.bf16.mxu0 0
        %601 = vmatpush1.bf16.msra.mxu0 0
        %602 = vmatprep.subr.bf16.mxu0 0
        %603 = vmatpush1.bf16.msra.mxu0 0
        %604 = vmatprep.subr.bf16.mxu0 0
        %605 = vmatpush1.bf16.msra.mxu0 0
        %606 = vmatprep.subr.bf16.mxu0 0
        %607 = vmatpush1.bf16.msra.mxu0 0
        %608 = vmatprep.subr.bf16.mxu0 0
        %609 = vmatpush1.bf16.msra.mxu0 0
        %610 = vmatprep.subr.bf16.mxu0 0
        %611 = vmatpush1.bf16.msra.mxu0 0
        %612 = vmatprep.subr.bf16.mxu0 0
        %613 = vmatpush1.bf16.msra.mxu0 0
        %614 = vmatprep.subr.bf16.mxu0 0
        %615 = vmatpush1.bf16.msra.mxu0 0
        %616 = vmatprep.subr.bf16.mxu0 0
        %617 = vmatpush1.bf16.msra.mxu0 0
        %618 = vmatprep.subr.bf16.mxu0 0
        %619 = vmatpush1.bf16.msra.mxu0 0
        %620 = vmatprep.mubr.bf16.mxu0 0
        %621 = vmatmul.mubr.bf16.gmra.mrb[0].mxu0 %v463
        %v622 = vpop.f32.mrb[0].mxu0
        %v623 = vadd.f32 0.0, %v622
        %v624 = vpop.f32.mrb[0].mxu0
        %v625 = vadd.f32 0.0, %v624
        %v626 = vpop.f32.mrb[0].mxu0
        %v627 = vpop.f32.mrb[0].mxu0
        %628 = vdwg.mxu0
        %629 = vst [vmem:[%s297] sm:$0xff] %v500
        %630 = vst [vmem:[%s297 + $0x8] sm:$0xff] %v502
        %631 = vst [vmem:[%s297 + $0x10] sm:$0xff] %v541
        %632 = vst [vmem:[%s297 + $0x18] sm:$0xff] %v543
        %633 = vst [vmem:[%s297 + $0x20] sm:$0xff] %v582
        %634 = vst [vmem:[%s297 + $0x28] sm:$0xff] %v584
        %635 = vst [vmem:[%s297 + $0x30] sm:$0xff] %v623
        %636 = vst [vmem:[%s297 + $0x38] sm:$0xff] %v625
        %v637 = vld [vmem:[%s303] sm:$0xff]
        %v638 = vadd.f32 %v500, %v502
        %v639 = vadd.f32 %v638, %v541
        %v640 = vadd.f32 %v639, %v543
        %v641 = vadd.f32 %v640, %v582
        %v642 = vadd.f32 %v641, %v584
        %v643 = vadd.f32 %v642, %v623
        %v644 = vadd.f32 %v643, %v625
        %645 = vadd.xlane.f32.xlu0 %v644
        %v646 = vpop.xlane.xlu0 %645
        %v647 = vadd.f32 %v637, %v646
        %vm648 = vcmask 7168
        %649 = vst.msk [vmem:[%s303] sm:$0xff] %vm648, %v647
        %v650 = vld [vmem:[%s307] sm:$0xff]
        %v651 = vmul.f32 %v500, %v500
        %v652 = vmul.f32 %v502, %v502
        %v653 = vmul.f32 %v541, %v541
        %v654 = vmul.f32 %v543, %v543
        %v655 = vmul.f32 %v582, %v582
        %v656 = vmul.f32 %v584, %v584
        %v657 = vmul.f32 %v623, %v623
        %v658 = vmul.f32 %v625, %v625
        %v659 = vadd.f32 %v651, %v652
        %v660 = vadd.f32 %v659, %v653
        %v661 = vadd.f32 %v660, %v654
        %v662 = vadd.f32 %v661, %v655
        %v663 = vadd.f32 %v662, %v656
        %v664 = vadd.f32 %v663, %v657
        %v665 = vadd.f32 %v664, %v658
        %666 = vadd.xlane.f32.xlu0 %v665
        %v667 = vpop.xlane.xlu0 %666
        %v668 = vadd.f32 %v650, %v667
        %669 = vst.msk [vmem:[%s307] sm:$0xff] %vm648, %v668
        %s670 = sadd.s32 %s20, %s21
        %s671 = smul.u32 8, %s670
        %p672 = scmp.lt.s32.totalorder %s671, 15
        %s673 = scalar_select %p672, %s671, 15
        %s674 = smul.addr %s673, 8
        %s675 = scalar_lea.vmem %s2, %s674
        %p676 = scmp.lt.s32.totalorder %s20, 1
        %s677 = scalar_select %p676, %s20, 1
        %s678 = smul.addr %s677, 8
        %s679 = scalar_lea.vmem %s3, %s678
        %p680 = scmp.lt.s32.totalorder %s20, 1
        %s681 = scalar_select %p680, %s20, 1
        %s682 = smul.addr %s681, 8
        %s683 = scalar_lea.vmem %s4, %s682
        // Predicated region
        $region56: #{convt_bn_relu.2} parent=46 // pred_check
          %p684 = pneg %p97
        $region57: #{convt_bn_relu.2} parent=46 // pred_check_branch
          %686 = sbr.rel (%p684) target = $region59
        $region58: #{convt_bn_relu.2} parent=46 // pred_region
          %s687 = sadd.s32 %s20, %s21
          %s688 = smul.u32 8, %s687
        $region59: #{convt_bn_relu.2} parent=46 // pred_fallthru
          _
        // Predicated region
        $region60: #{convt_bn_relu.2} parent=46 // pred_check
          %p689 = pneg %p123
        $region61: #{convt_bn_relu.2} parent=46 // pred_check_branch
          %691 = sbr.rel (%p689) target = $region63
        $region62: #{convt_bn_relu.2} parent=46 // pred_region
          _
        $region63: #{convt_bn_relu.2} parent=46 // pred_fallthru
          _
        // Predicated region
        $region64: #{convt_bn_relu.2} parent=46 // pred_check
          %p692 = pneg %p149
        $region65: #{convt_bn_relu.2} parent=46 // pred_check_branch
          %694 = sbr.rel (%p692) target = $region67
        $region66: #{convt_bn_relu.2} parent=46 // pred_region
          _
        $region67: #{convt_bn_relu.2} parent=46 // pred_fallthru
          _
      $region47: #{convt_bn_relu.2} parent=5 // pred_fallthru
        _
      %p695 = scmp.le.s32.totalorder 2, %s11
      // Predicated region
      $region68: #{convt_bn_relu.2} parent=5 // pred_check
        %p696 = pneg %p695
      $region69: #{convt_bn_relu.2} parent=5 // pred_check_branch
        %698 = sbr.rel (%p696) target = $region71
      $region70: #{convt_bn_relu.2} parent=5 // pred_region
        %s699 = ssub.s32 %s11, 2
        // Predicated region
        $region72: #{convt_bn_relu.2} parent=70 // pred_check
          %p700 = pneg %p103
        $region73: #{convt_bn_relu.2} parent=70 // pred_check_branch
          %702 = sbr.rel (%p700) target = $region75
        $region74: #{convt_bn_relu.2} parent=70 // pred_region
          %s703 = sadd.s32 %s22, %s23
          %s704 = smul.u32 8, %s703
          %p705 = scmp.lt.s32.totalorder %s704, 15
          %s706 = scalar_select %p705, %s704, 15
          %s707 = smul.addr %s706, 8
          %s708 = scalar_lea.vmem %s2, %s707
        $region75: #{convt_bn_relu.2} parent=70 // pred_fallthru
          _
        // Predicated region
        $region76: #{convt_bn_relu.2} parent=70 // pred_check
          %p709 = pneg %p129
        $region77: #{convt_bn_relu.2} parent=70 // pred_check_branch
          %711 = sbr.rel (%p709) target = $region79
        $region78: #{convt_bn_relu.2} parent=70 // pred_region
          %p712 = scmp.lt.s32.totalorder %s22, 1
          %s713 = scalar_select %p712, %s22, 1
          %s714 = smul.addr %s713, 8
          %s715 = scalar_lea.vmem %s3, %s714
        $region79: #{convt_bn_relu.2} parent=70 // pred_fallthru
          _
        // Predicated region
        $region80: #{convt_bn_relu.2} parent=70 // pred_check
          %p716 = pneg %p155
        $region81: #{convt_bn_relu.2} parent=70 // pred_check_branch
          %718 = sbr.rel (%p716) target = $region83
        $region82: #{convt_bn_relu.2} parent=70 // pred_region
          %p719 = scmp.lt.s32.totalorder %s22, 1
          %s720 = scalar_select %p719, %s22, 1
          %s721 = smul.addr %s720, 8
          %s722 = scalar_lea.vmem %s4, %s721
        $region83: #{convt_bn_relu.2} parent=70 // pred_fallthru
          _
      $region71: #{convt_bn_relu.2} parent=5 // pred_fallthru
        _
    $region6: #{convt_bn_relu.2} parent=1 // loop_footer
      %s15 = sadd.s32 1, %s11
    $region7: #{convt_bn_relu.2} parent=1 // loop_footer_branch
      %10 = sbr.rel target = $region3
    $region8: #{convt_bn_relu.2} parent=1 // loop_exit
      _

</llo_original>
